<compile_context>
chip_gen: v7x
topology: tpu7x:2x2x1
jax: 0.10.0
libtpu: 0.0.40
codegen_flags: <defaults>
</compile_context>

<pallas_src>
import itertools

import numpy as np
import jax
import jax.numpy as jnp
from jax.experimental import pallas as pl
from jax.experimental.pallas import tpu as pltpu


def _encoder_binary_kernel(xe_ref, t_ref, y_ref, wbt_ref, out_ref):
    """One batch tile, batch on the lane axis.

    xe_ref : (D, TB)  int8   encoded x: 1 -> 1, 0 -> 0, non-binary -> -NC
    t_ref  : (1, TB)  f32    raw treatment values
    y_ref  : (1, TB)  f32    raw outcome values
    wbt_ref: (2, NC)  f32    row 0 = dummy Linear(1,1) weights w_i, row 1 = biases b_i
    out_ref: (1, TB)  f32    z_logits (lane-dense store)
    """
    d = xe_ref.shape[0]
    nc = wbt_ref.shape[1]
    tb = t_ref.shape[1]

    # Combination index ("code") per batch element, itertools.product order:
    #   i = t*2^D + x_0*2^(D-1) + ... + x_{D-1}*2^0.
    # Exact-equality semantics of the torch loop: any coordinate that is not
    # exactly 0/1 (encoded as -NC for x; tested in-kernel for t) pushes the code
    # out of [0, NC-1] so it matches no combination.
    t = t_ref[...]
    code = jnp.where(t == 1.0, jnp.float32(2 ** d),
                     jnp.where(t == 0.0, jnp.float32(0.0), jnp.float32(-nc)))
    xe = xe_ref[...].astype(jnp.float32)                      # (D, TB)
    for k in range(d):                                        # D is tiny -> static unroll
        code = code + xe[k:k + 1, :] * jnp.float32(2 ** (d - 1 - k))

    # mask[i, b] == torch's `correct_network` for combination i, element b.
    ids = jax.lax.broadcasted_iota(jnp.int32, (nc, tb), 0).astype(jnp.float32)
    mask = (ids == code).astype(jnp.float32)                  # (NC, TB)

    # Fused w/b table lookup on the MXU: s[0]=w[code], s[1]=b[code] (0 if no match).
    s = jnp.dot(wbt_ref[...], mask, preferred_element_type=jnp.float32)  # (2, TB)

    # z = y * w[code] + b[code]; lane-dense (1, TB) store.
    out_ref[...] = y_ref[...] * s[0:1, :] + s[1:2, :]


def make_encoder_params(input_dim, key):
    """Deterministic parameters for the 2**(input_dim+1) Linear(1,1) dummies.
    nn.Linear(1,1) default init is U(-1, 1) for both weight and bias."""
    nc = 2 ** (input_dim + 1)
    kw, kb = jax.random.split(key)
    w = jax.random.uniform(kw, (nc,), jnp.float32, -1.0, 1.0)
    b = jax.random.uniform(kb, (nc,), jnp.float32, -1.0, 1.0)
    return dict(wbt=jnp.stack([w, b], axis=0))                # (2, NC)


def encoder_forward(x, t, y, params, *, block_b=32768):
    """Mirrors Encoder.forward(x, t, y) with z_mode='binary'."""
    assert block_b % 128 == 0
    b, d = x.shape
    wbt = params["wbt"]
    nc = wbt.shape[1]
    assert nc == 2 ** (d + 1)
    assert nc <= 128, "int8 'never-match' encoding needs 2**(D+1) <= 128"

    # Exact 3-valued encode of x (preserves torch's exact == semantics), int8 to
    # shrink the only real wrapper-side relayout (the x transpose) by 4x.
    xf = x.astype(jnp.float32)
    x_enc = jnp.where(xf == 1.0, 1, jnp.where(xf == 0.0, 0, -nc)).astype(jnp.int8)
    x_enc_t = x_enc.T                                         # (D, B) int8
    t_row = t.astype(jnp.float32).reshape(1, b)               # free reshape (batch -> lanes)
    y_row = y.astype(jnp.float32).reshape(1, b)               # free reshape

    if b <= block_b:
        tb = max(128, ((b + 127) // 128) * 128)
    else:
        tb = block_b
    bp = ((b + tb - 1) // tb) * tb
    pad = bp - b
    if pad:
        # Padded lanes decode to combination 0 and produce garbage; sliced off below.
        x_enc_t = jnp.pad(x_enc_t, ((0, 0), (0, pad)))
        t_row = jnp.pad(t_row, ((0, 0), (0, pad)))
        y_row = jnp.pad(y_row, ((0, 0), (0, pad)))

    out = pl.pallas_call(
        _encoder_binary_kernel,
        out_shape=jax.ShapeDtypeStruct((1, bp), jnp.float32),
        grid_spec=pltpu.PrefetchScalarGridSpec(
            num_scalar_prefetch=0,
            grid=(bp // tb,),
            in_specs=[
                pl.BlockSpec((d, tb), lambda i: (0, i)),       # encoded x tile (int8)
                pl.BlockSpec((1, tb), lambda i: (0, i)),       # t tile
                pl.BlockSpec((1, tb), lambda i: (0, i)),       # y tile
                pl.BlockSpec((2, nc), lambda i: (0, 0)),       # w/b table (resident)
            ],
            out_specs=pl.BlockSpec((1, tb), lambda i: (0, i)),
        ),
        compiler_params=pltpu.CompilerParams(
            dimension_semantics=("parallel",),
            vmem_limit_bytes=32 * 1024 * 1024),
    )(x_enc_t, t_row, y_row, wbt)

    z_logits = out[:, :b].T                                    # (B, 1) float32
    z_mu = 0
    z_var = 0
    return z_mu, z_var, z_logits


encoder_forward = jax.jit(encoder_forward, static_argnames=("block_b",))


def _reference_forward(x, t, y, params):
    """Plain-numpy replica of the torch loop, for a sanity check."""
    wbt = np.asarray(params["wbt"], dtype=np.float64)
    w, bb = wbt[0], wbt[1]
    xn, tn, yn = np.asarray(x), np.asarray(t), np.asarray(y)
    d = xn.shape[1]
    combs = list(itertools.product([0, 1], repeat=d + 1))
    out = np.zeros((xn.shape[0], 1), dtype=np.float64)
    for i, c in enumerate(combs):
        t_c = np.float32(c[0])
        x_c = np.asarray(c[1:], dtype=np.float32)
        tmatch = (tn == t_c).astype(np.float64)                              # (B,1)
        xmatch = (xn == x_c).astype(np.float64).prod(axis=1, keepdims=True)  # (B,1)
        out = out + (yn.astype(np.float64) * w[i] + bb[i]) * tmatch * xmatch
    return out


if __name__ == "__main__":
    key = jax.random.PRNGKey(0)
    k_param, k_x, k_t, k_y = jax.random.split(key, 4)

    input_dim = 4
    params = make_encoder_params(input_dim, k_param)

    # Small test (pads 8 -> 128 lanes, single grid step).
    batch = 8
    x = jax.random.bernoulli(k_x, 0.5, (batch, input_dim)).astype(jnp.float32)
    t = jax.random.bernoulli(k_t, 0.5, (batch, 1)).astype(jnp.float32)
    y = jax.random.normal(k_y, (batch, 1), jnp.float32)

    _, _, z_logits = encoder_forward(x, t, y, params)
    z_logits = jax.block_until_ready(z_logits)
    ref = _reference_forward(x, t, y, params)
    np.testing.assert_allclose(np.asarray(z_logits), ref, rtol=1e-5, atol=1e-5)

    # Multi-tile grid + padding + non-binary coordinates (must match nothing,
    # exactly like torch's float ==).
    batch2 = 600
    x2 = jax.random.bernoulli(k_x, 0.5, (batch2, input_dim)).astype(jnp.float32)
    t2 = jax.random.bernoulli(k_t, 0.5, (batch2, 1)).astype(jnp.float32)
    y2 = jax.random.normal(k_y, (batch2, 1), jnp.float32)
    x2 = x2.at[0, 0].set(0.37)
    t2 = t2.at[5, 0].set(2.0)

    _, _, z2 = encoder_forward(x2, t2, y2, params, block_b=256)
    z2 = jax.block_until_ready(z2)
    ref2 = _reference_forward(x2, t2, y2, params)
    np.testing.assert_allclose(np.asarray(z2), ref2, rtol=1e-5, atol=1e-5)

    print("KERNEL_OK")
</pallas_src>

<mosaic_0001>
module attributes {stable_mosaic.version = 11 : i64} {
  func.func @_encoder_binary_kernel(%arg0: i32, %arg1: memref<4x128xi8, #tpu.memory_space<vmem>>, %arg2: memref<1x128xf32, #tpu.memory_space<vmem>>, %arg3: memref<1x128xf32, #tpu.memory_space<vmem>>, %arg4: memref<2x32xf32, #tpu.memory_space<vmem>>, %arg5: memref<1x128xf32, #tpu.memory_space<vmem>>) attributes {dimension_semantics = [#tpu.dimension_semantics<parallel>], iteration_bounds = array<i64: 1>, scalar_prefetch = 0 : i64, scratch_operands = 0 : i64, tpu.core_type = #tpu.core_type<tc>, window_params = [{transform_indices = @transform_0, window_bounds = array<i64: 4, 128>}, {transform_indices = @transform_1, window_bounds = array<i64: 1, 128>}, {transform_indices = @transform_2, window_bounds = array<i64: 1, 128>}, {pipeline_mode = #tpu.pipeline_mode<synchronous>, transform_indices = @transform_3, window_bounds = array<i64: 2, 32>}, {transform_indices = @transform_4, window_bounds = array<i64: 1, 128>}]} {
    %c0 = arith.constant 0 : index
    %c0_0 = arith.constant 0 : index
    %0 = vector.load %arg2[%c0, %c0_0] : memref<1x128xf32, #tpu.memory_space<vmem>>, vector<1x128xf32>
    %cst = arith.constant 1.000000e+00 : f32
    %1 = vector.broadcast %cst : f32 to vector<1x128xf32>
    %2 = arith.cmpf oeq, %0, %1 : vector<1x128xf32>
    %cst_1 = arith.constant 0.000000e+00 : f32
    %3 = vector.broadcast %cst_1 : f32 to vector<1x128xf32>
    %4 = arith.cmpf oeq, %0, %3 : vector<1x128xf32>
    %cst_2 = arith.constant 0.000000e+00 : f32
    %cst_3 = arith.constant -3.200000e+01 : f32
    %5 = vector.broadcast %cst_2 : f32 to vector<1x128xf32>
    %6 = vector.broadcast %cst_3 : f32 to vector<1x128xf32>
    %7 = arith.select %4, %5, %6 : vector<1x128xi1>, vector<1x128xf32>
    %cst_4 = arith.constant 1.600000e+01 : f32
    %8 = vector.broadcast %cst_4 : f32 to vector<1x128xf32>
    %9 = arith.select %2, %8, %7 : vector<1x128xi1>, vector<1x128xf32>
    %c0_5 = arith.constant 0 : index
    %c0_6 = arith.constant 0 : index
    %10 = vector.load %arg1[%c0_5, %c0_6] : memref<4x128xi8, #tpu.memory_space<vmem>>, vector<4x128xi8>
    %11 = arith.sitofp %10 : vector<4x128xi8> to vector<4x128xf32>
    %12 = vector.extract_strided_slice %11 {offsets = [0, 0], sizes = [1, 128], strides = [1, 1]} : vector<4x128xf32> to vector<1x128xf32>
    %cst_7 = arith.constant 8.000000e+00 : f32
    %13 = vector.broadcast %cst_7 : f32 to vector<1x128xf32>
    %14 = arith.mulf %12, %13 : vector<1x128xf32>
    %15 = arith.addf %9, %14 : vector<1x128xf32>
    %16 = vector.extract_strided_slice %11 {offsets = [1, 0], sizes = [1, 128], strides = [1, 1]} : vector<4x128xf32> to vector<1x128xf32>
    %cst_8 = arith.constant 4.000000e+00 : f32
    %17 = vector.broadcast %cst_8 : f32 to vector<1x128xf32>
    %18 = arith.mulf %16, %17 : vector<1x128xf32>
    %19 = arith.addf %15, %18 : vector<1x128xf32>
    %20 = vector.extract_strided_slice %11 {offsets = [2, 0], sizes = [1, 128], strides = [1, 1]} : vector<4x128xf32> to vector<1x128xf32>
    %cst_9 = arith.constant 2.000000e+00 : f32
    %21 = vector.broadcast %cst_9 : f32 to vector<1x128xf32>
    %22 = arith.mulf %20, %21 : vector<1x128xf32>
    %23 = arith.addf %19, %22 : vector<1x128xf32>
    %24 = vector.extract_strided_slice %11 {offsets = [3, 0], sizes = [1, 128], strides = [1, 1]} : vector<4x128xf32> to vector<1x128xf32>
    %cst_10 = arith.constant 1.000000e+00 : f32
    %25 = vector.broadcast %cst_10 : f32 to vector<1x128xf32>
    %26 = arith.mulf %24, %25 : vector<1x128xf32>
    %27 = arith.addf %23, %26 : vector<1x128xf32>
    %28 = tpu.iota {dimensions = array<i32: 0>} : vector<32x128xi32>
    %29 = arith.sitofp %28 : vector<32x128xi32> to vector<32x128xf32>
    %30 = vector.broadcast %27 : vector<1x128xf32> to vector<32x128xf32>
    %31 = arith.cmpf oeq, %29, %30 : vector<32x128xf32>
    %32 = arith.extui %31 : vector<32x128xi1> to vector<32x128xi32>
    %33 = arith.sitofp %32 : vector<32x128xi32> to vector<32x128xf32>
    %c0_11 = arith.constant 0 : index
    %c0_12 = arith.constant 0 : index
    %34 = vector.load %arg4[%c0_11, %c0_12] : memref<2x32xf32, #tpu.memory_space<vmem>>, vector<2x32xf32>
    %cst_13 = arith.constant dense<0.000000e+00> : vector<2x128xf32>
    %35 = tpu.matmul %34, %33, %cst_13 {dimension_numbers = #tpu.dot_dimension_numbers<[1], [0], [0], [1], [0, 0, 1, 1], [], []>} : vector<2x32xf32>, vector<32x128xf32>, vector<2x128xf32> -> vector<2x128xf32>
    %c0_14 = arith.constant 0 : index
    %c0_15 = arith.constant 0 : index
    %36 = vector.load %arg3[%c0_14, %c0_15] : memref<1x128xf32, #tpu.memory_space<vmem>>, vector<1x128xf32>
    %37 = vector.extract_strided_slice %35 {offsets = [0, 0], sizes = [1, 128], strides = [1, 1]} : vector<2x128xf32> to vector<1x128xf32>
    %38 = arith.mulf %36, %37 : vector<1x128xf32>
    %39 = vector.extract_strided_slice %35 {offsets = [1, 0], sizes = [1, 128], strides = [1, 1]} : vector<2x128xf32> to vector<1x128xf32>
    %40 = arith.addf %38, %39 : vector<1x128xf32>
    %c0_16 = arith.constant 0 : index
    %c0_17 = arith.constant 0 : index
    %41 = vector.load %arg5[%c0_16, %c0_17] : memref<1x128xf32, #tpu.memory_space<vmem>>, vector<1x128xf32>
    tpu.vector_store %arg5[%c0_16, %c0_17], %40 {strides = array<i32>} : memref<1x128xf32, #tpu.memory_space<vmem>>, vector<1x128xf32>,
    return
  }
  func.func @transform_0(%arg0: i32) -> (i32, i32) {
    %c0_i32 = arith.constant 0 : i32
    %c0_i32_0 = arith.constant 0 : i32
    return %c0_i32, %arg0 : i32, i32
  }
  func.func @transform_1(%arg0: i32) -> (i32, i32) {
    %c0_i32 = arith.constant 0 : i32
    %c0_i32_0 = arith.constant 0 : i32
    return %c0_i32, %arg0 : i32, i32
  }
  func.func @transform_2(%arg0: i32) -> (i32, i32) {
    %c0_i32 = arith.constant 0 : i32
    %c0_i32_0 = arith.constant 0 : i32
    return %c0_i32, %arg0 : i32, i32
  }
  func.func @transform_3(%arg0: i32) -> (i32, i32) {
    %c0_i32 = arith.constant 0 : i32
    %c0_i32_0 = arith.constant 0 : i32
    %c0_i32_1 = arith.constant 0 : i32
    return %c0_i32, %c0_i32_0 : i32, i32
  }
  func.func @transform_4(%arg0: i32) -> (i32, i32) {
    %c0_i32 = arith.constant 0 : i32
    %c0_i32_0 = arith.constant 0 : i32
    return %c0_i32, %arg0 : i32, i32
  }
}

</mosaic_0001>

<llo_original>
// kernel: encoder_forward.1
$region0: #{encoder_forward.1}
  #allocation0 [shape = 'u32[]', space=smem, size = 0x4, offset = 0x4, fixed_abs, tag = 'smem constant byte address 0x4 - core index']
  #allocation1 [shape = 'u32[144,128]{1,0:T(1,128)}', space=vmem, size = 0x12000, scoped, tag = 'internal scratch']
  %s0 = inlined_call_operand.vmem [shape: s8[4,128], index: 0, kind: input, shape index: {}]
  %s1 = inlined_call_operand.vmem [shape: f32[1,128], index: 1, kind: input, shape index: {}]
  %s2 = inlined_call_operand.vmem [shape: f32[1,128], index: 2, kind: input, shape index: {}]
  %s3 = inlined_call_operand.vmem [shape: f32[2,32], index: 3, kind: input, shape index: {}]
  %s4 = inlined_call_operand.vmem [shape: f32[1,128], index: 4, kind: output, shape index: {}]
  %s5 = sld [smem:[#allocation0]]
  $region26: #{encoder_forward.1} parent=0
    _
  %s7 = ssub.s32 1, %s5
  %s8 = scalar_select 0, %s7, %s5
  // Predicated region
  $region2: #{encoder_forward.1} parent=0 // pred_check
    _
  $region3: #{encoder_forward.1} parent=0 // pred_check_branch
    %10 = sbr.rel (0) target = $region5
  $region4: #{encoder_forward.1} parent=0 // pred_region
    _
  $region5: #{encoder_forward.1} parent=0 // pred_fallthru
    _
  // Predicated region
  $region6: #{encoder_forward.1} parent=0 // pred_check
    _
  $region7: #{encoder_forward.1} parent=0 // pred_check_branch
    %12 = sbr.rel (0) target = $region9
  $region8: #{encoder_forward.1} parent=0 // pred_region
    _
  $region9: #{encoder_forward.1} parent=0 // pred_fallthru
    _
  // Predicated region
  $region10: #{encoder_forward.1} parent=0 // pred_check
    _
  $region11: #{encoder_forward.1} parent=0 // pred_check_branch
    %14 = sbr.rel (0) target = $region13
  $region12: #{encoder_forward.1} parent=0 // pred_region
    _
  $region13: #{encoder_forward.1} parent=0 // pred_fallthru
    _
  // Predicated region
  $region14: #{encoder_forward.1} parent=0 // pred_check
    _
  $region15: #{encoder_forward.1} parent=0 // pred_check_branch
    %16 = sbr.rel (0) target = $region17
  $region16: #{encoder_forward.1} parent=0 // pred_region
    _
  $region17: #{encoder_forward.1} parent=0 // pred_fallthru
    _
  %v17 = vld [vmem:[%s1] sm:$0x1]
  %vm18 = vcmp.eq.f32.partialorder %v17, 1.0
  %vm19 = vcmp.eq.f32.partialorder %v17, 0.0
  %v20 = vsel %vm19, 0.0, -32.0
  %v21 = vsel %vm18, 16.0, %v20
  %v22 = vld [vmem:[%s0] sm:$0x1]
  %v23 = vunpack.c.0.s8 %v22
  %v24 = vcvt.s32.f32 %v23
  %v25 = vmul.f32 %v24, 8.0
  %v26 = vadd.f32 %v21, %v25
  %v27 = vmul.f32 %v24, 4.0
  %v30 = vunpack.c.l.s4 1966171168
  %v31 = vunpack.c.0.s8 %v30
  %v32 = vlaneseq
  %v33 = vshrl.u32 %v32, 7
  %v34 = vsub.s32 %v31, %v33
  %v35 = vrot.slane %v27, %v34
  %v36 = vcombine.high %v35, %v35
  %v38 = vunpack.c.l.s4 1966171168
  %v39 = vunpack.c.0.s8 %v38
  %v40 = vlaneseq
  %v41 = vshrl.u32 %v40, 7
  %v42 = vsub.s32 %v39, %v41
  %v43 = vrot.slane %v36, %v42
  %v45 = vadd.f32 %v26, %v43
  %v46 = vmul.f32 %v24, 2.0
  %v49 = vunpack.c.l.s4 1966171168
  %v50 = vunpack.c.0.s8 %v49
  %v51 = vlaneseq
  %v52 = vshrl.u32 %v51, 7
  %v53 = vsub.s32 %v50, %v52
  %v54 = vrot.slane %v46, %v53
  %v56 = vunpack.c.l.s4 1966171168
  %v57 = vunpack.c.0.s8 %v56
  %v58 = vlaneseq
  %v59 = vshrl.u32 %v58, 7
  %v60 = vsub.s32 %v57, %v59
  %v61 = vrot.slane %v54, %v60
  %v62 = vcombine.high %v61, %v61
  %v64 = vadd.f32 %v45, %v62
  %v67 = vunpack.c.l.s4 1966171168
  %v68 = vunpack.c.0.s8 %v67
  %v69 = vlaneseq
  %v70 = vshrl.u32 %v69, 7
  %v71 = vsub.s32 %v68, %v70
  %v72 = vrot.slane %v24, %v71
  %v73 = vcombine.high %v72, %v72
  %v75 = vunpack.c.l.s4 1966171168
  %v76 = vunpack.c.0.s8 %v75
  %v77 = vlaneseq
  %v78 = vshrl.u32 %v77, 7
  %v79 = vsub.s32 %v76, %v78
  %v80 = vrot.slane %v73, %v79
  %v81 = vcombine.high %v80, %v80
  %v83 = vadd.f32 %v64, %v81
  %v84 = vlaneseq
  %v85 = vshrl.u32 %v84, 7
  %v86 = vadd.s32 %v85, 8
  %v87 = vadd.s32 %v85, 16
  %v88 = vadd.s32 %v85, 24
  %v89 = vcvt.s32.f32 %v85
  %v90 = vcvt.s32.f32 %v86
  %v91 = vcvt.s32.f32 %v87
  %v92 = vcvt.s32.f32 %v88
  %v94 = vlaneseq
  %v95 = vshrl.u32 %v94, 7
  %v96 = vsub.s32 0, %v95
  %v97 = vrot.slane %v83, %v96
  %vm99 = vcmp.eq.f32.partialorder %v89, %v97
  %vm100 = vcmp.eq.f32.partialorder %v90, %v97
  %vm101 = vcmp.eq.f32.partialorder %v91, %v97
  %vm102 = vcmp.eq.f32.partialorder %v92, %v97
  %v103 = vsel %vm99, 1, 0
  %v104 = vsel %vm100, 1, 0
  %v105 = vsel %vm101, 1, 0
  %v106 = vsel %vm102, 1, 0
  %v107 = vcvt.s32.f32 %v103
  %v108 = vcvt.s32.f32 %v104
  %v109 = vcvt.s32.f32 %v105
  %v110 = vcvt.s32.f32 %v106
  %v111 = vld [vmem:[%s3] sm:$0x3]
  %vm112 = vcmask 261120
  %v114 = vsel %vm112, %v111, 0
  %116 = vmatprep.subr.mxu0 0.0
  %117 = vmatpush1.msra.mxu0 %v107
  %118 = vmatprep.subr.mxu0 0.0
  %119 = vmatpush1.msra.mxu0 %v108
  %120 = vmatprep.subr.mxu0 0.0
  %121 = vmatpush1.msra.mxu0 %v109
  %122 = vmatprep.subr.mxu0 0.0
  %123 = vmatpush1.msra.mxu0 %v110
  %124 = vmatprep.subr.mxu0 0.0
  %125 = vmatpush1.msra.mxu0 0.0
  %126 = vmatprep.subr.mxu0 0.0
  %127 = vmatpush1.msra.mxu0 0.0
  %128 = vmatprep.subr.mxu0 0.0
  %129 = vmatpush1.msra.mxu0 0.0
  %130 = vmatprep.subr.mxu0 0.0
  %131 = vmatpush1.msra.mxu0 0.0
  %132 = vmatprep.subr.mxu0 0.0
  %133 = vmatpush1.msra.mxu0 0.0
  %134 = vmatprep.subr.mxu0 0.0
  %135 = vmatpush1.msra.mxu0 0.0
  %136 = vmatprep.subr.mxu0 0.0
  %137 = vmatpush1.msra.mxu0 0.0
  %138 = vmatprep.subr.mxu0 0.0
  %139 = vmatpush1.msra.mxu0 0.0
  %140 = vmatprep.subr.mxu0 0.0
  %141 = vmatpush1.msra.mxu0 0.0
  %142 = vmatprep.subr.mxu0 0.0
  %143 = vmatpush1.msra.mxu0 0.0
  %144 = vmatprep.subr.mxu0 0.0
  %145 = vmatpush1.msra.mxu0 0.0
  %146 = vmatprep.subr.mxu0 0.0
  %147 = vmatpush1.msra.mxu0 0.0
  %148 = vmatprep.subr.mxu0 0.0
  %149 = vmatpush1.msra.mxu0 0.0
  %150 = vmatprep.subr.mxu0 0.0
  %151 = vmatpush1.msra.mxu0 0.0
  %152 = vmatprep.subr.mxu0 0.0
  %153 = vmatpush1.msra.mxu0 0.0
  %154 = vmatprep.subr.mxu0 0.0
  %155 = vmatpush1.msra.mxu0 0.0
  %156 = vmatprep.subr.mxu0 0.0
  %157 = vmatpush1.msra.mxu0 0.0
  %158 = vmatprep.subr.mxu0 0.0
  %159 = vmatpush1.msra.mxu0 0.0
  %160 = vmatprep.subr.mxu0 0.0
  %161 = vmatpush1.msra.mxu0 0.0
  %162 = vmatprep.subr.mxu0 0.0
  %163 = vmatpush1.msra.mxu0 0.0
  %164 = vmatprep.subr.mxu0 0.0
  %165 = vmatpush1.msra.mxu0 0.0
  %166 = vmatprep.subr.mxu0 0.0
  %167 = vmatpush1.msra.mxu0 0.0
  %168 = vmatprep.subr.mxu0 0.0
  %169 = vmatpush1.msra.mxu0 0.0
  %170 = vmatprep.subr.mxu0 0.0
  %171 = vmatpush1.msra.mxu0 0.0
  %172 = vmatprep.subr.mxu0 0.0
  %173 = vmatpush1.msra.mxu0 0.0
  %174 = vmatprep.subr.mxu0 0.0
  %175 = vmatpush1.msra.mxu0 0.0
  %176 = vmatprep.subr.mxu0 0.0
  %177 = vmatpush1.msra.mxu0 0.0
  %178 = vmatprep.subr.mxu0 0.0
  %179 = vmatpush1.msra.mxu0 0.0
  %180 = vmatprep.mubr.f32.mxu0 0.0
  %181 = vmatmul.mubr.f32.gmra.mrb[0].mxu0 %v114
  %v182 = vpop.f32.mrb[0].mxu0
  %v183 = vadd.f32 0.0, %v182
  %v184 = vpop.f32.mrb[0].mxu0
  %185 = vdwg.mxu0
  %v186 = vld [vmem:[%s2] sm:$0x1]
  %v187 = vmul.f32 %v186, %v183
  %v190 = vunpack.c.l.s4 1966171168
  %v191 = vunpack.c.0.s8 %v190
  %v192 = vlaneseq
  %v193 = vshrl.u32 %v192, 7
  %v194 = vsub.s32 %v191, %v193
  %v195 = vrot.slane %v183, %v194
  %v196 = vcombine.high %v195, %v195
  %v198 = vunpack.c.l.s4 1966171168
  %v199 = vunpack.c.0.s8 %v198
  %v200 = vlaneseq
  %v201 = vshrl.u32 %v200, 7
  %v202 = vsub.s32 %v199, %v201
  %v203 = vrot.slane %v196, %v202
  %v205 = vadd.f32 %v187, %v203
  %206 = vst [vmem:[%s4] sm:$0x1] %v205
  // Predicated region
  $region18: #{encoder_forward.1} parent=0 // pred_check
    _
  $region19: #{encoder_forward.1} parent=0 // pred_check_branch
    %208 = sbr.rel (0) target = $region21
  $region20: #{encoder_forward.1} parent=0 // pred_region
    _
  $region21: #{encoder_forward.1} parent=0 // pred_fallthru
    _
  // Predicated region
  $region22: #{encoder_forward.1} parent=0 // pred_check
    _
  $region23: #{encoder_forward.1} parent=0 // pred_check_branch
    %210 = sbr.rel (0) target = $region25
  $region24: #{encoder_forward.1} parent=0 // pred_region
    _
  $region25: #{encoder_forward.1} parent=0 // pred_fallthru
    _

</llo_original>
